<compile_context>
chip_gen: v6e
topology: v6e:2x2x1
jax: 0.10.0
libtpu: 0.0.40
codegen_flags: <defaults>
</compile_context>

<pallas_src>
import functools

import jax
import jax.numpy as jnp
from jax import lax
from jax.experimental import pallas as pl
from jax.experimental.pallas import tpu as pltpu

LANES = 128
BYTE_BUDGET = 4 * 1024 * 1024        # per-input bytes per grid block
VMEM_LIMIT_BYTES = 32 * 1024 * 1024  # 2 inputs x 2 buffers x 4 MiB = 16 MiB used


def _round_up(x, m):
    return ((x + m - 1) // m) * m


def _sq_diff_partial_kernel(o_ref, t_ref, out_ref, *, rows, block_rows, group,
                            inv_n, need_mask):
    """Accumulate sum((o - t)^2) / N over this tile into a (group, 128) partial.

    Grid steps are independent (no carried state) -> the grid axis is
    "parallel" (megacore-shardable). The inner loop streams `group`-row chunks
    so the cast / diff / square never materialize as full-block VMEM temps.
    """
    n_groups = block_rows // group

    def compute(masked):
        def body(g, acc):
            i = pl.multiple_of(g * group, group)
            o = o_ref[pl.ds(i, group), :].astype(jnp.float32)
            t = t_ref[pl.ds(i, group), :].astype(jnp.float32)
            d = o - t
            if masked:
                local = lax.broadcasted_iota(jnp.int32, (group, LANES), 0)
                grow = pl.program_id(0) * block_rows + i + local
                # jnp.where (not mul-by-mask) so garbage/NaN rows from the
                # partial last block never propagate into the sum.
                d = jnp.where(grow < rows, d, 0.0)
            return acc + d * d

        acc = lax.fori_loop(0, n_groups, body,
                            jnp.zeros((group, LANES), jnp.float32),
                            unroll=n_groups <= 4)
        out_ref[...] = acc * jnp.float32(inv_n)

    if need_mask:
        last = pl.num_programs(0) - 1

        @pl.when(pl.program_id(0) == last)
        def _():
            compute(True)

        @pl.when(pl.program_id(0) != last)
        def _():
            compute(False)
    else:
        compute(False)


def rmsd_loss(output, target):
    if output.shape != target.shape:
        raise ValueError(
            "Output and target must have the same shape for RMSD calculation.")
    n_elems = output.size
    inv_n = 1.0 / float(n_elems)

    itemsize = jnp.dtype(output.dtype).itemsize
    # Sub-32-bit dtypes pack along sublanes: f32 -> 8 rows, bf16 -> 16, int8 -> 32.
    align_rows = max(8, 32 // max(itemsize, 1))
    align_elems = align_rows * LANES

    o_flat = jnp.ravel(output)   # metadata-only for contiguous inputs
    t_flat = jnp.ravel(target)

    bulk = (n_elems // align_elems) * align_elems
    tail = n_elems - bulk

    total = jnp.float32(0.0)
    if tail:
        # Sub-aligned ragged tail (< align_elems elements): tiny plain-JAX term
        # instead of a whole-array jnp.pad read+write of both inputs.
        od = o_flat[bulk:].astype(jnp.float32)
        td = t_flat[bulk:].astype(jnp.float32)
        total = total + jnp.sum((od - td) ** 2) * jnp.float32(inv_n)

    if bulk:
        o2 = (o_flat if not tail else o_flat[:bulk]).reshape(-1, LANES)
        t2 = (t_flat if not tail else t_flat[:bulk]).reshape(-1, LANES)
        rows = bulk // LANES

        # Byte-budget block sizing (~4 MiB per input), rounded to a multiple of
        # 64 rows so the accumulator gets 8 independent vreg chains.
        max_block_rows = max(align_rows,
                             (BYTE_BUDGET // (LANES * itemsize)) // 64 * 64)
        # Cap at ceil(rows/2) (alignment-rounded) so there are >= 2 tiles
        # whenever alignment allows -> both v7x TensorCores get work.
        quantum = 64 if rows >= 128 else align_rows
        target_rows = _round_up(-(-rows // 2), quantum)
        block_rows = min(max_block_rows, target_rows)

        num_tiles = pl.cdiv(rows, block_rows)
        need_mask = (num_tiles * block_rows) != rows
        # Accumulator height: largest power-of-two (<=64) dividing the block.
        group = next(g for g in (64, 32, 16, 8) if block_rows % g == 0)

        partials = pl.pallas_call(
            functools.partial(
                _sq_diff_partial_kernel,
                rows=rows, block_rows=block_rows, group=group,
                inv_n=inv_n, need_mask=need_mask),
            out_shape=jax.ShapeDtypeStruct((num_tiles, group, LANES),
                                           jnp.float32),
            grid_spec=pltpu.PrefetchScalarGridSpec(
                num_scalar_prefetch=0,
                grid=(num_tiles,),
                in_specs=[
                    pl.BlockSpec((block_rows, LANES), lambda i: (i, 0)),
                    pl.BlockSpec((block_rows, LANES), lambda i: (i, 0)),
                ],
                out_specs=pl.BlockSpec((None, group, LANES),
                                       lambda i: (i, 0, 0)),
            ),
            compiler_params=pltpu.CompilerParams(
                dimension_semantics=("parallel",),
                vmem_limit_bytes=VMEM_LIMIT_BYTES,
            ),
        )(o2, t2)

        total = total + jnp.sum(partials)

    # Partials are already scaled by 1/N, so this is sqrt(mean(sq_diff)).
    return jnp.sqrt(total)


if __name__ == "__main__":
    key = jax.random.PRNGKey(0)
    k1, k2 = jax.random.split(key)
    # Small NCHW-like shapes, consistent with an arbitrary-shape loss.
    shape = (2, 4, 16, 16)
    output = jax.random.normal(k1, shape, dtype=jnp.float32)
    target = jax.random.normal(k2, shape, dtype=jnp.float32)

    rmsd = jax.block_until_ready(rmsd_loss(output, target))

    # Reference check (plain JAX, mirrors the torch semantics).
    ref = jnp.sqrt(jnp.mean((output - target) ** 2))
    assert jnp.allclose(rmsd, ref, rtol=1e-5, atol=1e-6), (rmsd, ref)
    print("KERNEL_OK")
</pallas_src>

<mosaic_0001>
module attributes {stable_mosaic.version = 11 : i64} {
  func.func @_sq_diff_partial_kernel(%arg0: i32, %arg1: memref<8x128xf32, #tpu.memory_space<vmem>>, %arg2: memref<8x128xf32, #tpu.memory_space<vmem>>, %arg3: memref<1x8x128xf32, #tpu.memory_space<vmem>>) attributes {dimension_semantics = [#tpu.dimension_semantics<parallel>], iteration_bounds = array<i64: 2>, scalar_prefetch = 0 : i64, scratch_operands = 0 : i64, tpu.core_type = #tpu.core_type<tc>, window_params = [{transform_indices = @transform_0, window_bounds = array<i64: 8, 128>}, {transform_indices = @transform_1, window_bounds = array<i64: 8, 128>}, {transform_indices = @transform_2, window_bounds = array<i64: 1, 8, 128>}]} {
    %cst = arith.constant 0.000000e+00 : f32
    %0 = vector.broadcast %cst : f32 to vector<8x128xf32>
    %c0_i32 = arith.constant 0 : i32
    %c8_i32 = arith.constant 8 : i32
    %1 = arith.muli %c0_i32, %c8_i32 : i32
    %2 = tpu.assume_multiple %1, 8 : i32
    %3 = arith.index_cast %2 : i32 to index
    %c0 = arith.constant 0 : index
    %4 = vector.load %arg1[%3, %c0] : memref<8x128xf32, #tpu.memory_space<vmem>>, vector<8x128xf32>
    %5 = arith.index_cast %2 : i32 to index
    %c0_0 = arith.constant 0 : index
    %6 = vector.load %arg2[%5, %c0_0] : memref<8x128xf32, #tpu.memory_space<vmem>>, vector<8x128xf32>
    %7 = arith.subf %4, %6 : vector<8x128xf32>
    %8 = arith.mulf %7, %7 : vector<8x128xf32>
    %9 = arith.addf %0, %8 : vector<8x128xf32>
    %c1_i32 = arith.constant 1 : i32
    %cst_1 = arith.constant 4.8828125E-4 : f32
    %10 = vector.broadcast %cst_1 : f32 to vector<8x128xf32>
    %11 = arith.mulf %9, %10 : vector<8x128xf32>
    %c0_2 = arith.constant 0 : index
    %c0_3 = arith.constant 0 : index
    %c0_4 = arith.constant 0 : index
    %12 = vector.load %arg3[%c0_2, %c0_3, %c0_4] : memref<1x8x128xf32, #tpu.memory_space<vmem>>, vector<1x8x128xf32>
    %13 = vector.shape_cast %12 : vector<1x8x128xf32> to vector<8x128xf32>
    %14 = vector.shape_cast %11 : vector<8x128xf32> to vector<1x8x128xf32>
    tpu.vector_store %arg3[%c0_2, %c0_3, %c0_4], %14 {strides = array<i32>} : memref<1x8x128xf32, #tpu.memory_space<vmem>>, vector<1x8x128xf32>,
    return
  }
  func.func @transform_0(%arg0: i32) -> (i32, i32) {
    %c0_i32 = arith.constant 0 : i32
    %c0_i32_0 = arith.constant 0 : i32
    return %arg0, %c0_i32 : i32, i32
  }
  func.func @transform_1(%arg0: i32) -> (i32, i32) {
    %c0_i32 = arith.constant 0 : i32
    %c0_i32_0 = arith.constant 0 : i32
    return %arg0, %c0_i32 : i32, i32
  }
  func.func @transform_2(%arg0: i32) -> (i32, i32, i32) {
    %c0_i32 = arith.constant 0 : i32
    %c0_i32_0 = arith.constant 0 : i32
    %c0_i32_1 = arith.constant 0 : i32
    return %arg0, %c0_i32, %c0_i32_0 : i32, i32, i32
  }
}

</mosaic_0001>

<llo_original>
// kernel: tpu_custom_call.1
$region0: #{tpu_custom_call.1}
  #allocation0 [shape = 'u32[]', space=smem, size = 0x4, offset = 0x4, fixed_abs, tag = 'smem constant byte address 0x4 - core index']
  #allocation1 [shape = 'u32[144,128]{1,0:T(1,128)}', space=vmem, size = 0x12000, scoped, tag = 'internal scratch']
  %s0 = inlined_call_operand.hbm [shape: f32[16,128], index: 0, kind: input, shape index: {}]
  %s1 = inlined_call_operand.hbm [shape: f32[16,128], index: 1, kind: input, shape index: {}]
  %s2 = inlined_call_operand.hbm [shape: f32[2,8,128], index: 2, kind: output, shape index: {}]
  %s3 = sld [smem:[#allocation0]]
  $region49: #{tpu_custom_call.1} parent=0
    _
  %s5 = ssub.s32 1, %s3
  %s6 = scalar_select 0, %s5, %s3
  $region1: #{tpu_custom_call.1} parent=0
    #allocation2 [shape = 'u8[8192]{0}', space=vmem, size = 0x2000, scoped, tag = 'input window, operand 0']
    #allocation3 [shape = 's32[2]{0}', space=sflag, size = 0x8, scoped, tag = 'scoped memory for tpu_custom_call.1']
    #allocation4 [shape = 's32[2]{0}', space=sflag, size = 0x8, scoped, tag = 'scoped memory for tpu_custom_call.1']
    #allocation5 [shape = 'u8[8192]{0}', space=vmem, size = 0x2000, scoped, tag = 'input window, operand 1']
    #allocation6 [shape = 's32[2]{0}', space=sflag, size = 0x8, scoped, tag = 'scoped memory for tpu_custom_call.1']
    #allocation7 [shape = 'u8[8192]{0}', space=vmem, size = 0x2000, scoped, tag = 'output window, operand 0']
    %7 = vsyncpa [#allocation3], 0
    %s8 = scalar_lea.sflag [#allocation3], 1
    %9 = vsyncpa %s8, 0
    %10 = vsyncpa [#allocation6], 0
    %s11 = scalar_lea.sflag [#allocation6], 1
    %12 = vsyncpa %s11, 0
    %13 = vsyncpa [#allocation4], 0
    %s14 = scalar_lea.sflag [#allocation4], 1
    %15 = vsyncpa %s14, 0
    loop: start=0, step=1, limit=4
    $region2: #{tpu_custom_call.1} parent=1 // loop_pre_header
      _
    $region3: #{tpu_custom_call.1} parent=1 // loop_header
      %s17 = sphi 0, %s21
      %p18 = scmp.ge.s32.totalorder %s17, 4
      %s27 = sphi 0, %s29
      %s30 = sphi 0, %s27
      %s31 = sphi 0, %s30
      %s47 = sphi 0, %s31
      %s53 = sphi 0, %s55
      %s56 = sphi 0, %s53
      %s57 = sphi 0, %s56
      %s73 = sphi 0, %s57
      %s79 = sphi 0, %s81
      %s82 = sphi 0, %s79
      %s83 = sphi 0, %s82
      %s99 = sphi 0, %s83
    $region4: #{tpu_custom_call.1} parent=1 // loop_header_branch
      %20 = sbr.rel (%p18) target = $region8
    $region5: #{tpu_custom_call.1} parent=1 // loop_body
      %s22 = ssub.s32 %s17, 1
      %s23 = ssub.s32 %s17, 2
      %s24 = sadd.s32 %s17, 1
      %s25 = ssub.s32 %s17, %s24
      %p26 = scmp.eq.s32.totalorder %s25, 0
      %s28 = sadd.s32 %s27, 1
      %s29 = scalar_select %p26, %s27, %s28
      %p32 = pneg %p26
      %p33 = scmp.eq.s32.totalorder %s17, 1
      %p34 = por %p32, %p33
      %p35 = scmp.ne.s32.totalorder %s27, %s30
      %p36 = scmp.eq.s32.totalorder %s17, 0
      %p37 = por %p35, %p36
      %p38 = scmp.ne.s32.totalorder %s27, %s30
      %p39 = scmp.eq.s32.totalorder %s22, 1
      %p40 = por %p38, %p39
      %p41 = scmp.ne.s32.totalorder %s30, %s31
      %p42 = scmp.eq.s32.totalorder %s22, 0
      %p43 = por %p41, %p42
      %p44 = scmp.ne.s32.totalorder %s30, %s31
      %p45 = scmp.eq.s32.totalorder %s23, 1
      %p46 = por %p44, %p45
      %p48 = scmp.ne.s32.totalorder %s31, %s47
      %p49 = scmp.eq.s32.totalorder %s23, 0
      %p50 = por %p48, %p49
      %s51 = ssub.s32 %s17, %s24
      %p52 = scmp.eq.s32.totalorder %s51, 0
      %s54 = sadd.s32 %s53, 1
      %s55 = scalar_select %p52, %s53, %s54
      %p58 = pneg %p52
      %p59 = scmp.eq.s32.totalorder %s17, 1
      %p60 = por %p58, %p59
      %p61 = scmp.ne.s32.totalorder %s53, %s56
      %p62 = scmp.eq.s32.totalorder %s17, 0
      %p63 = por %p61, %p62
      %p64 = scmp.ne.s32.totalorder %s53, %s56
      %p65 = scmp.eq.s32.totalorder %s22, 1
      %p66 = por %p64, %p65
      %p67 = scmp.ne.s32.totalorder %s56, %s57
      %p68 = scmp.eq.s32.totalorder %s22, 0
      %p69 = por %p67, %p68
      %p70 = scmp.ne.s32.totalorder %s56, %s57
      %p71 = scmp.eq.s32.totalorder %s23, 1
      %p72 = por %p70, %p71
      %p74 = scmp.ne.s32.totalorder %s57, %s73
      %p75 = scmp.eq.s32.totalorder %s23, 0
      %p76 = por %p74, %p75
      %s77 = ssub.s32 %s17, %s24
      %p78 = scmp.eq.s32.totalorder %s77, 0
      %s80 = sadd.s32 %s79, 1
      %s81 = scalar_select %p78, %s79, %s80
      %p84 = pneg %p78
      %p85 = scmp.eq.s32.totalorder %s17, 1
      %p86 = por %p84, %p85
      %p87 = scmp.ne.s32.totalorder %s79, %s82
      %p88 = scmp.eq.s32.totalorder %s17, 0
      %p89 = por %p87, %p88
      %p90 = scmp.ne.s32.totalorder %s79, %s82
      %p91 = scmp.eq.s32.totalorder %s22, 1
      %p92 = por %p90, %p91
      %p93 = scmp.ne.s32.totalorder %s82, %s83
      %p94 = scmp.eq.s32.totalorder %s22, 0
      %p95 = por %p93, %p94
      %p96 = scmp.ne.s32.totalorder %s82, %s83
      %p97 = scmp.eq.s32.totalorder %s23, 1
      %p98 = por %p96, %p97
      %p100 = scmp.ne.s32.totalorder %s83, %s99
      %p101 = scmp.eq.s32.totalorder %s23, 0
      %p102 = por %p100, %p101
      %p103 = scmp.le.s32.totalorder 1, %s17
      %p104 = scmp.lt.s32.totalorder %s17, 3
      %p105 = pnand %p103, %p104
      %p106 = pneg %p105
      // Predicated region
      $region9: #{tpu_custom_call.1} parent=5 // pred_check
        _
      $region10: #{tpu_custom_call.1} parent=5 // pred_check_branch
        %108 = sbr.rel (%p105) target = $region12
      $region11: #{tpu_custom_call.1} parent=5 // pred_region
        %s109 = ssub.s32 %s17, 1
      $region12: #{tpu_custom_call.1} parent=5 // pred_fallthru
        _
      %p110 = scmp.lt.s32.totalorder %s17, 2
      // Predicated region
      $region13: #{tpu_custom_call.1} parent=5 // pred_check
        %p111 = pneg %p110
      $region14: #{tpu_custom_call.1} parent=5 // pred_check_branch
        %113 = sbr.rel (%p111) target = $region16
      $region15: #{tpu_custom_call.1} parent=5 // pred_region
        // Predicated region
        $region17: #{tpu_custom_call.1} parent=15 // pred_check
          %p114 = pneg %p37
        $region18: #{tpu_custom_call.1} parent=15 // pred_check_branch
          %116 = sbr.rel (%p114) target = $region20
        $region19: #{tpu_custom_call.1} parent=15 // pred_region
          %s117 = sand.u32 %s27, 1
          %s118 = scalar_lea.sflag [#allocation3], %s117
          %s119 = sand.u32 %s27, 1
          %s120 = smul.addr %s119, 8
          %s121 = scalar_lea.vmem [#allocation2], %s120
          %s123 = ssub.s32 128, 128
          %124 = vsyncadd %s118, %s123
          %s125 = smul.addr %s17, 128
          %s126 = scalar_lea.hbm %s0, %s125
          %s128 = sshll.u32 %s121, 4
          %s129 = int_to_ptr.vmem [resolvable:$true] %s128
          %131 = dma.hbm_to_vmem [thread:$0]  %s126, 128, %s129, %s118
        $region20: #{tpu_custom_call.1} parent=15 // pred_fallthru
          _
        // Predicated region
        $region21: #{tpu_custom_call.1} parent=15 // pred_check
          %p132 = pneg %p63
        $region22: #{tpu_custom_call.1} parent=15 // pred_check_branch
          %134 = sbr.rel (%p132) target = $region24
        $region23: #{tpu_custom_call.1} parent=15 // pred_region
          %s135 = sand.u32 %s53, 1
          %s136 = scalar_lea.sflag [#allocation6], %s135
          %s137 = sand.u32 %s53, 1
          %s138 = smul.addr %s137, 8
          %s139 = scalar_lea.vmem [#allocation5], %s138
          %s141 = ssub.s32 128, 128
          %142 = vsyncadd %s136, %s141
          %s143 = smul.addr %s17, 128
          %s144 = scalar_lea.hbm %s1, %s143
          %s146 = sshll.u32 %s139, 4
          %s147 = int_to_ptr.vmem [resolvable:$true] %s146
          %149 = dma.hbm_to_vmem [thread:$0]  %s144, 128, %s147, %s136
        $region24: #{tpu_custom_call.1} parent=15 // pred_fallthru
          _
      $region16: #{tpu_custom_call.1} parent=5 // pred_fallthru
        _
      %p150 = scmp.le.s32.totalorder 1, %s17
      %p151 = scmp.lt.s32.totalorder %s17, 3
      %p152 = pnand %p150, %p151
      %p153 = pneg %p152
      // Predicated region
      $region25: #{tpu_custom_call.1} parent=5 // pred_check
        _
      $region26: #{tpu_custom_call.1} parent=5 // pred_check_branch
        %155 = sbr.rel (%p152) target = $region28
      $region27: #{tpu_custom_call.1} parent=5 // pred_region
        %s156 = ssub.s32 %s17, 1
        %s157 = sand.u32 %s30, 1
        %s158 = scalar_lea.sflag [#allocation3], %s157
        %s159 = sand.u32 %s30, 1
        %s160 = smul.addr %s159, 8
        %s161 = scalar_lea.vmem [#allocation2], %s160
        // Predicated region
        $region29: #{tpu_custom_call.1} parent=27 // pred_check
          %p162 = pneg %p43
        $region30: #{tpu_custom_call.1} parent=27 // pred_check_branch
          %164 = sbr.rel (%p162) target = $region32
        $region31: #{tpu_custom_call.1} parent=27 // pred_region
          %165 = dma.done %s158, 128
        $region32: #{tpu_custom_call.1} parent=27 // pred_fallthru
          _
        %s166 = sand.u32 %s56, 1
        %s167 = scalar_lea.sflag [#allocation6], %s166
        %s168 = sand.u32 %s56, 1
        %s169 = smul.addr %s168, 8
        %s170 = scalar_lea.vmem [#allocation5], %s169
        // Predicated region
        $region33: #{tpu_custom_call.1} parent=27 // pred_check
          %p171 = pneg %p69
        $region34: #{tpu_custom_call.1} parent=27 // pred_check_branch
          %173 = sbr.rel (%p171) target = $region36
        $region35: #{tpu_custom_call.1} parent=27 // pred_region
          %174 = dma.done %s167, 128
        $region36: #{tpu_custom_call.1} parent=27 // pred_fallthru
          _
        %s175 = sand.u32 %s30, 1
        %s176 = scalar_lea.sflag [#allocation3], %s175
        %s177 = sand.u32 %s30, 1
        %s178 = smul.addr %s177, 8
        %s179 = scalar_lea.vmem [#allocation2], %s178
        %p180 = pneg %p43
        %p181 = pneg %p40
        %s182 = sand.u32 %s56, 1
        %s183 = scalar_lea.sflag [#allocation6], %s182
        %s184 = sand.u32 %s56, 1
        %s185 = smul.addr %s184, 8
        %s186 = scalar_lea.vmem [#allocation5], %s185
        %p187 = pneg %p69
        %p188 = pneg %p66
        %p189 = pneg %p95
        %p190 = pneg %p92
        %s191 = sand.u32 %s82, 1
        %s192 = scalar_lea.sflag [#allocation4], %s191
        %s193 = sand.u32 %s82, 1
        %s194 = smul.addr %s193, 8
        %s195 = scalar_lea.vmem [#allocation7], %s194
        %v196 = vld [vmem:[%s161] sm:$0xff]
        %v197 = vld [vmem:[%s170] sm:$0xff]
        %v198 = vsub.f32 %v196, %v197
        %v199 = vmul.f32 %v198, %v198
        %v200 = vadd.f32 %v199, 0.0
        %v201 = vmul.f32 %v200, 0.00048828125
        %202 = vst [vmem:[%s195] sm:$0xff] %v201
        %s203 = sand.u32 %s82, 1
        %s204 = scalar_lea.sflag [#allocation4], %s203
        %s205 = sand.u32 %s82, 1
        %s206 = smul.addr %s205, 8
        %s207 = scalar_lea.vmem [#allocation7], %s206
        // Predicated region
        $region37: #{tpu_custom_call.1} parent=27 // pred_check
          %p208 = pneg %p92
        $region38: #{tpu_custom_call.1} parent=27 // pred_check_branch
          %210 = sbr.rel (%p208) target = $region40
        $region39: #{tpu_custom_call.1} parent=27 // pred_region
          %s212 = ssub.s32 128, 128
          %213 = vsyncadd %s204, %s212
          %s214 = smul.addr %s22, 128
          %s215 = scalar_lea.hbm %s2, %s214
          %s217 = sshll.u32 %s207, 4
          %s218 = int_to_ptr.vmem [resolvable:$true] %s217
          %220 = dma.vmem_to_hbm [thread:$0]  %s218, 128, %s215, %s204
        $region40: #{tpu_custom_call.1} parent=27 // pred_fallthru
          _
      $region28: #{tpu_custom_call.1} parent=5 // pred_fallthru
        _
      %p221 = scmp.le.s32.totalorder 2, %s17
      // Predicated region
      $region41: #{tpu_custom_call.1} parent=5 // pred_check
        %p222 = pneg %p221
      $region42: #{tpu_custom_call.1} parent=5 // pred_check_branch
        %224 = sbr.rel (%p222) target = $region44
      $region43: #{tpu_custom_call.1} parent=5 // pred_region
        %s225 = ssub.s32 %s17, 2
        // Predicated region
        $region45: #{tpu_custom_call.1} parent=43 // pred_check
          %p226 = pneg %p98
        $region46: #{tpu_custom_call.1} parent=43 // pred_check_branch
          %228 = sbr.rel (%p226) target = $region48
        $region47: #{tpu_custom_call.1} parent=43 // pred_region
          %s229 = sand.u32 %s83, 1
          %s230 = scalar_lea.sflag [#allocation4], %s229
          %s231 = sand.u32 %s83, 1
          %s232 = smul.addr %s231, 8
          %s233 = scalar_lea.vmem [#allocation7], %s232
          %234 = dma.done %s230, 128
        $region48: #{tpu_custom_call.1} parent=43 // pred_fallthru
          _
      $region44: #{tpu_custom_call.1} parent=5 // pred_fallthru
        _
    $region6: #{tpu_custom_call.1} parent=1 // loop_footer
      %s21 = sadd.s32 1, %s17
    $region7: #{tpu_custom_call.1} parent=1 // loop_footer_branch
      %16 = sbr.rel target = $region3
    $region8: #{tpu_custom_call.1} parent=1 // loop_exit
      _
    %235 = vsyncpa [#allocation3], 1
    %s236 = scalar_lea.sflag [#allocation3], 1
    %237 = vsyncpa %s236, 1
    %238 = vsyncpa [#allocation6], 1
    %s239 = scalar_lea.sflag [#allocation6], 1
    %240 = vsyncpa %s239, 1
    %241 = vsyncpa [#allocation4], 1
    %s242 = scalar_lea.sflag [#allocation4], 1
    %243 = vsyncpa %s242, 1

</llo_original>
